<compile_context>
chip_gen: v7x
topology: tpu7x:2x2x1
jax: 0.10.0
libtpu: 0.0.40
codegen_flags: <defaults>
</compile_context>

<pallas_src>
import functools

import numpy as np
import jax
import jax.numpy as jnp
from jax import lax
from jax.experimental import pallas as pl
from jax.experimental.pallas import tpu as pltpu

_LN_EPS = 1e-5          # torch.nn.LayerNorm default
_SQRT1_2 = 0.7071067811865476


# --------------------------- in-kernel math helpers ---------------------------
def _gelu(x):
    # exact GELU: 0.5*x*(1+erf(x/sqrt(2))); erf via Abramowitz & Stegun 7.1.26
    # (|abs err| < 1.5e-7) -- an intentional, documented deviation from exact erf.
    u = x * _SQRT1_2
    au = jnp.abs(u)
    sgn = jnp.where(u >= 0.0, 1.0, -1.0)
    t = 1.0 / (1.0 + 0.3275911 * au)
    poly = ((((1.061405429 * t - 1.453152027) * t + 1.421413741) * t
             - 0.284496736) * t + 0.254829592) * t
    erf_u = sgn * (1.0 - poly * jnp.exp(-au * au))
    return 0.5 * x * (1.0 + erf_u)


def _layernorm_ch(y, g, b):
    # One-pass LayerNorm over the channel axis (axis 0 / sublanes); g, b: (C, 1).
    n = y.shape[0]
    inv_n = 1.0 / n
    s1 = jnp.sum(y, axis=0, keepdims=True)
    s2 = jnp.sum(y * y, axis=0, keepdims=True)
    mu = s1 * inv_n
    var = jnp.maximum(s2 * inv_n - mu * mu, 0.0)    # clamp: one-pass var can go < 0
    return (y - mu) * lax.rsqrt(var + _LN_EPS) * g + b


# ------------------------------- fused kernel --------------------------------
def _make_kernel(p_dims, p_len, offs1, apply_post2, roll_like_jnp):
    """Fused conv1(+GELU+LN) -> conv2(+GELU+LN) kernel for one batch element.

    Activations are (C, p_len): channels on sublanes, flattened padded spatial
    grid (Dp, Hp, Wp) on lanes.  Each 3x3x3 tap is a uniform flat shift.
    """
    Dp, Hp, Wp = p_dims
    # conv2: stride 1, pad 1 -> centered tap offsets on the padded grid.
    offs2 = [(kd - 1) * Hp * Wp + (kh - 1) * Wp + (kw - 1)
             for kd in range(3) for kh in range(3) for kw in range(3)]

    def shifted(x, off):
        # want result[:, p] = x[:, p + off] for all positions that survive masking;
        # interior reads never wrap (checked by construction in the wrapper).
        if off == 0:
            return x
        s = (-off) % p_len if roll_like_jnp else off % p_len
        return pltpu.roll(x, s, 1)                  # XLU lane rotation, static shift

    def conv_taps(x, w_ref, offsets):
        # sum over taps of (cout, K) x (K, p_len) f32 MXU matmuls.
        acc = None
        for t, off in enumerate(offsets):
            prod = jnp.dot(w_ref[t], shifted(x, off),
                           preferred_element_type=jnp.float32)
            acc = prod if acc is None else acc + prod
        return acc

    def kernel(x_ref, w1_ref, w2_ref, v_ref, m_ref, o_ref):
        x = x_ref[...].astype(jnp.float32)          # single upcast of the bf16 input
        mask = m_ref[...]                           # (1, p_len): 1 on interior, else 0
        b1, g1, bt1 = v_ref[:, 0:1], v_ref[:, 1:2], v_ref[:, 2:3]
        b2, g2, bt2 = v_ref[:, 3:4], v_ref[:, 4:5], v_ref[:, 5:6]

        # ---- conv1 (strided, via space-to-depth tap groups) + GELU + LN -------
        y1 = conv_taps(x, w1_ref, offs1) + b1
        # mask = halo zeroing == conv2's zero padding (also kills garbage positions)
        y1 = _layernorm_ch(_gelu(y1), g1, bt1) * mask

        # ---- conv2 (stride 1, pad 1): 27 shifted taps, no staging buffer ------
        y2 = conv_taps(y1, w2_ref, offs2) + b2
        if apply_post2:
            y2 = _layernorm_ch(_gelu(y2), g2, bt2)
        o_ref[...] = y2.astype(o_ref.dtype)         # lane-dense (cout, p_len) store

    return kernel


# ------------------------------ host-side prep -------------------------------
def _normalize3(v):
    return (v, v, v) if isinstance(v, int) else tuple(v)


def _prep_input(x_ncdhw, stride, padding):
    """NCDHW -> (B, K1, p_len) channel-first, space-to-depth'd, placed on the
    conv2 padded grid (Dp, Hp, Wp) and flattened (lane axis = spatial)."""
    B, C = x_ncdhw.shape[0], x_ncdhw.shape[1]
    spatial = x_ncdhw.shape[2:]
    sd, sh, sw = stride
    outs, nblk, pads_sp, lpad = [], [], [], []
    for size, s, p in zip(spatial, stride, padding):
        o = (size + 2 * p - 3) // s + 1
        q = max(o + 2 // s, -(-(p + size) // s))    # blocks needed to cover all taps
        outs.append(o)
        nblk.append(q)
        pads_sp.append((p, q * s - size - p))
        lpad.append(0 if s == 1 else 1)             # block-grid left pad per dim
    Do, Ho, Wo = outs
    Dq, Hq, Wq = nblk
    Dp, Hp, Wp = Do + 2, Ho + 2, Wo + 2             # conv2 padded grid

    xp = jnp.pad(x_ncdhw, ((0, 0), (0, 0)) + tuple(pads_sp))
    xp = xp.reshape(B, C, Dq, sd, Hq, sh, Wq, sw)
    xp = jnp.transpose(xp, (0, 3, 5, 7, 1, 2, 4, 6))          # (B, jd,jh,jw, C, blocks)
    xp = xp.reshape(B, sd * sh * sw * C, Dq, Hq, Wq)
    grid_pads = tuple((L, Pd - L - q)
                      for L, Pd, q in zip(lpad, (Dp, Hp, Wp), (Dq, Hq, Wq)))
    xp = jnp.pad(xp, ((0, 0), (0, 0)) + grid_pads)            # place blocks on padded grid

    p_valid = Dp * Hp * Wp
    p_len = -(-p_valid // 128) * 128                          # lane-align the flat axis
    xf = xp.reshape(B, sd * sh * sw * C, p_valid)
    xf = jnp.pad(xf, ((0, 0), (0, 0), (0, p_len - p_valid)))
    return xf, (Do, Ho, Wo), (Dp, Hp, Wp), p_len, lpad


def _merge_conv1_weights(w, stride):
    """w: (Cout, Cin, 3,3,3) -> (Q, Cout, prod(stride)*Cin): per-tap-group LHS for
    the transposed (channel-first) matmul; K ordering matches _prep_input."""
    cout, cin = w.shape[0], w.shape[1]
    sd, sh, sw = stride
    Qd, Qh, Qw = 1 + 2 // sd, 1 + 2 // sh, 1 + 2 // sw
    wp = jnp.pad(w, ((0, 0), (0, 0),
                     (0, Qd * sd - 3), (0, Qh * sh - 3), (0, Qw * sw - 3)))
    wp = wp.reshape(cout, cin, Qd, sd, Qh, sh, Qw, sw)
    wp = jnp.transpose(wp, (2, 4, 6, 0, 3, 5, 7, 1))          # (Qd,Qh,Qw, cout, jd,jh,jw, cin)
    wp = wp.reshape(Qd * Qh * Qw, cout, sd * sh * sw * cin)
    return wp, (Qd, Qh, Qw)


def _conv2_tap_weights(w):
    """w: (Cout, Cin, 3,3,3) -> (27, Cout, Cin) per-tap LHS matrices."""
    cout, cin = w.shape[0], w.shape[1]
    return jnp.transpose(w, (2, 3, 4, 0, 1)).reshape(27, cout, cin)


def _interior_mask(p_dims, out_dims, p_len):
    Dp, Hp, Wp = p_dims
    Do, Ho, Wo = out_dims
    m3 = np.zeros((Dp, Hp, Wp), np.float32)
    m3[1:1 + Do, 1:1 + Ho, 1:1 + Wo] = 1.0
    m = np.zeros((1, p_len), np.float32)
    m[0, :Dp * Hp * Wp] = m3.reshape(-1)
    return jnp.asarray(m)


def _roll_matches_jnp():
    """Tiny one-off probe: does pltpu.roll follow jnp.roll's shift direction?
    (Runs once outside jit; makes the static shift sign robust either way.)"""
    def k(x_ref, o_ref):
        o_ref[...] = pltpu.roll(x_ref[...], 1, 1)
    x = jnp.tile(lax.iota(jnp.int32, 128)[None, :], (8, 1))
    out = pl.pallas_call(k, out_shape=jax.ShapeDtypeStruct((8, 128), jnp.int32))(x)
    return bool(int(out[0, 0]) == 127)


def project_forward(x_ncdhw, params, stride, padding, last=False, roll_like_jnp=True):
    """Forward of `project` (activate=GELU, norm=LayerNorm).  Input/output NCDHW."""
    stride = _normalize3(stride)
    padding = _normalize3(padding)
    cout = params["conv1_w"].shape[0]
    B = x_ncdhw.shape[0]

    x_flat, out_dims, p_dims, p_len, lpad = _prep_input(x_ncdhw, stride, padding)
    x_flat = x_flat.astype(jnp.bfloat16)            # halve the only streamed-input DMA
    Do, Ho, Wo = out_dims
    Dp, Hp, Wp = p_dims
    k1 = x_flat.shape[1]

    w1m, (Qd, Qh, Qw) = _merge_conv1_weights(params["conv1_w"].astype(jnp.float32), stride)
    w2m = _conv2_tap_weights(params["conv2_w"].astype(jnp.float32))
    # flat tap-group offsets for conv1 on the padded grid (matches w1m tap order)
    offs1 = [(qd + lpad[0] - 1) * Hp * Wp + (qh + lpad[1] - 1) * Wp + (qw + lpad[2] - 1)
             for qd in range(Qd) for qh in range(Qh) for qw in range(Qw)]

    zeros = jnp.zeros((cout,), jnp.float32)
    vecs = jnp.stack(                                # one (cout, 8) resident input
        [params["conv1_b"].astype(jnp.float32),
         params["norm1_w"].astype(jnp.float32),
         params["norm1_b"].astype(jnp.float32),
         params["conv2_b"].astype(jnp.float32),
         params.get("norm2_w", jnp.ones((cout,), jnp.float32)).astype(jnp.float32),
         params.get("norm2_b", zeros).astype(jnp.float32),
         zeros, zeros],
        axis=1)

    mask = _interior_mask(p_dims, out_dims, p_len)

    kernel = _make_kernel(p_dims, p_len, offs1, apply_post2=not last,
                          roll_like_jnp=roll_like_jnp)

    out = pl.pallas_call(
        kernel,
        out_shape=jax.ShapeDtypeStruct((B, cout, p_len), jnp.float32),
        grid_spec=pltpu.PrefetchScalarGridSpec(
            num_scalar_prefetch=0,
            grid=(B,),
            in_specs=[
                pl.BlockSpec((None, k1, p_len), lambda b: (b, 0, 0)),   # bf16 input slab
                pl.BlockSpec(w1m.shape, lambda b: (0, 0, 0)),           # conv1 taps (resident)
                pl.BlockSpec(w2m.shape, lambda b: (0, 0, 0)),           # conv2 taps (resident)
                pl.BlockSpec(vecs.shape, lambda b: (0, 0)),             # bias/gamma/beta
                pl.BlockSpec(mask.shape, lambda b: (0, 0)),             # interior mask
            ],
            out_specs=pl.BlockSpec((None, cout, p_len), lambda b: (b, 0, 0)),
        ),
        compiler_params=pltpu.CompilerParams(
            dimension_semantics=("parallel",)),      # B=2 steps -> both v7x TCs
    )(x_flat, w1m, w2m, vecs, mask)

    # lane-dense (B, cout, P) -> NCDHW: free reshape + cheap interior slice; no transpose.
    out = out[:, :, :Dp * Hp * Wp].reshape(B, cout, Dp, Hp, Wp)
    return out[:, :, 1:1 + Do, 1:1 + Ho, 1:1 + Wo]


# ----------------------- pure-JAX reference (for checking) -----------------------
def _reference_forward(x_ncdhw, params, stride, padding, last=False):
    from jax.scipy.special import erf

    def gelu(v):
        return 0.5 * v * (1.0 + erf(v * _SQRT1_2))

    def ln(v, g, b):
        mu = jnp.mean(v, axis=-1, keepdims=True)
        var = jnp.mean((v - mu) ** 2, axis=-1, keepdims=True)
        return (v - mu) * lax.rsqrt(var + _LN_EPS) * g + b

    def conv(v, w, b, s, p):
        wt = jnp.transpose(w, (2, 3, 4, 1, 0)).astype(jnp.float32)   # DHWIO
        y = lax.conv_general_dilated(
            v, wt, window_strides=s,
            padding=[(p[0], p[0]), (p[1], p[1]), (p[2], p[2])],
            dimension_numbers=("NDHWC", "DHWIO", "NDHWC"),
            preferred_element_type=jnp.float32,
            precision=lax.Precision.HIGHEST)
        return y + b

    x = jnp.transpose(x_ncdhw, (0, 2, 3, 4, 1)).astype(jnp.float32)
    # mirror the kernel: the input is streamed in bf16 (weights/accum stay f32)
    x = x.astype(jnp.bfloat16).astype(jnp.float32)
    x = conv(x, params["conv1_w"], params["conv1_b"], stride, padding)
    x = ln(gelu(x), params["norm1_w"], params["norm1_b"])
    x = conv(x, params["conv2_w"], params["conv2_b"], (1, 1, 1), (1, 1, 1))
    if not last:
        x = ln(gelu(x), params["norm2_w"], params["norm2_b"])
    return jnp.transpose(x, (0, 4, 1, 2, 3))


if __name__ == "__main__":
    key = jax.random.PRNGKey(0)
    ks = jax.random.split(key, 9)

    in_dim, out_dim = 4, 32
    stride, padding = (2, 2, 2), (1, 1, 1)
    B, D, H, W = 2, 8, 16, 16

    params = {
        "conv1_w": 0.05 * jax.random.normal(ks[0], (out_dim, in_dim, 3, 3, 3), jnp.float32),
        "conv1_b": 0.05 * jax.random.normal(ks[1], (out_dim,), jnp.float32),
        "conv2_w": 0.05 * jax.random.normal(ks[2], (out_dim, out_dim, 3, 3, 3), jnp.float32),
        "conv2_b": 0.05 * jax.random.normal(ks[3], (out_dim,), jnp.float32),
        "norm1_w": 1.0 + 0.1 * jax.random.normal(ks[4], (out_dim,), jnp.float32),
        "norm1_b": 0.1 * jax.random.normal(ks[5], (out_dim,), jnp.float32),
        "norm2_w": 1.0 + 0.1 * jax.random.normal(ks[6], (out_dim,), jnp.float32),
        "norm2_b": 0.1 * jax.random.normal(ks[7], (out_dim,), jnp.float32),
    }
    x = jax.random.normal(ks[8], (B, in_dim, D, H, W), jnp.float32)

    roll_like_jnp = _roll_matches_jnp()              # resolve static shift sign once

    fwd = jax.jit(functools.partial(project_forward, stride=stride, padding=padding,
                                    last=False, roll_like_jnp=roll_like_jnp))
    y = fwd(x, params)
    jax.block_until_ready(y)

    y_ref = _reference_forward(x, params, stride, padding, last=False)
    assert y.shape == (B, out_dim, D // 2, H // 2, W // 2), y.shape
    max_err = float(jnp.max(jnp.abs(y - y_ref)))
    # remaining diffs: accumulation order, A&S erf polynomial (<1.5e-7), one-pass LN
    assert jnp.allclose(y, y_ref, atol=3e-3, rtol=3e-3), max_err

    print("KERNEL_OK")
</pallas_src>

<mosaic_0001>
module attributes {stable_mosaic.version = 11 : i64} {
  func.func @k(%arg0: memref<8x128xi32, #tpu.memory_space<vmem>>, %arg1: memref<8x128xi32, #tpu.memory_space<vmem>>) attributes {dimension_semantics = [], scalar_prefetch = 0 : i64, scratch_operands = 0 : i64, tpu.core_type = #tpu.core_type<tc>} {
    %c0 = arith.constant 0 : index
    %c0_0 = arith.constant 0 : index
    %0 = vector.load %arg0[%c0, %c0_0] : memref<8x128xi32, #tpu.memory_space<vmem>>, vector<8x128xi32>
    %c1_i32 = arith.constant 1 : i32
    %1 = tpu.dynamic_rotate %0 by %c1_i32 dim 1 : vector<8x128xi32>, i32 -> vector<8x128xi32>
    %c0_1 = arith.constant 0 : index
    %c0_2 = arith.constant 0 : index
    %2 = vector.load %arg1[%c0_1, %c0_2] : memref<8x128xi32, #tpu.memory_space<vmem>>, vector<8x128xi32>
    tpu.vector_store %arg1[%c0_1, %c0_2], %1 {strides = array<i32>} : memref<8x128xi32, #tpu.memory_space<vmem>>, vector<8x128xi32>,
    return
  }
}

</mosaic_0001>

<llo_original>
// kernel: tpu_custom_call.1
$region0: #{tpu_custom_call.1}
  #allocation0 [shape = 'u32[]', space=smem, size = 0x4, offset = 0x4, fixed_abs, tag = 'smem constant byte address 0x4 - core index']
  #allocation1 [shape = 'u32[144,128]{1,0:T(1,128)}', space=vmem, size = 0x12000, scoped, tag = 'internal scratch']
  %s0 = inlined_call_operand.hbm [shape: s32[8,128], index: 0, kind: input, shape index: {}]
  %s1 = inlined_call_operand.hbm [shape: s32[8,128], index: 1, kind: output, shape index: {}]
  %s2 = sld [smem:[#allocation0]]
  $region18: #{tpu_custom_call.1} parent=0
    _
  %s4 = ssub.s32 1, %s2
  %s5 = scalar_select 0, %s4, %s2
  $region1: #{tpu_custom_call.1} parent=0
    #allocation2 [shape = 'u8[4096]{0}', space=vmem, size = 0x1000, scoped, tag = 'input window, operand 0, single buffered']
    #allocation3 [shape = 's32[1]{0}', space=sflag, size = 0x4, scoped, tag = 'scoped memory for tpu_custom_call.1']
    #allocation4 [shape = 's32[1]{0}', space=sflag, size = 0x4, scoped, tag = 'scoped memory for tpu_custom_call.1']
    #allocation5 [shape = 'u8[4096]{0}', space=vmem, size = 0x1000, scoped, tag = 'output window, operand 0, single buffered']
    %6 = vsyncpa [#allocation3], 0
    %7 = vsyncpa [#allocation4], 0
    // Predicated region
    $region2: #{tpu_custom_call.1} parent=1 // pred_check
      _
    $region3: #{tpu_custom_call.1} parent=1 // pred_check_branch
      %9 = sbr.rel (0) target = $region5
    $region4: #{tpu_custom_call.1} parent=1 // pred_region
      %s11 = ssub.s32 128, 128
      %12 = vsyncadd [#allocation3], %s11
      %s14 = sshll.u32 [#allocation2], 4
      %s15 = int_to_ptr.vmem [resolvable:$true] %s14
      %17 = dma.hbm_to_vmem [thread:$0]  %s0, 128, %s15, [#allocation3]
    $region5: #{tpu_custom_call.1} parent=1 // pred_fallthru
      _
    // Predicated region
    $region6: #{tpu_custom_call.1} parent=1 // pred_check
      _
    $region7: #{tpu_custom_call.1} parent=1 // pred_check_branch
      %19 = sbr.rel (0) target = $region9
    $region8: #{tpu_custom_call.1} parent=1 // pred_region
      %20 = dma.done [#allocation3], 128
    $region9: #{tpu_custom_call.1} parent=1 // pred_fallthru
      _
    %v21 = vld [vmem:[#allocation2] sm:$0xff]
    %22 = vrot.lane.b32.xlu0 %v21, 1
    %v23 = vpop.permute.xlu0 %22
    %24 = vst [vmem:[#allocation5] sm:$0xff] %v23
    // Predicated region
    $region10: #{tpu_custom_call.1} parent=1 // pred_check
      _
    $region11: #{tpu_custom_call.1} parent=1 // pred_check_branch
      %26 = sbr.rel (0) target = $region13
    $region12: #{tpu_custom_call.1} parent=1 // pred_region
      %s28 = ssub.s32 128, 128
      %29 = vsyncadd [#allocation4], %s28
      %s31 = sshll.u32 [#allocation5], 4
      %s32 = int_to_ptr.vmem [resolvable:$true] %s31
      %34 = dma.vmem_to_hbm [thread:$0]  %s32, 128, %s1, [#allocation4]
    $region13: #{tpu_custom_call.1} parent=1 // pred_fallthru
      _
    // Predicated region
    $region14: #{tpu_custom_call.1} parent=1 // pred_check
      _
    $region15: #{tpu_custom_call.1} parent=1 // pred_check_branch
      %36 = sbr.rel (0) target = $region17
    $region16: #{tpu_custom_call.1} parent=1 // pred_region
      %37 = dma.done [#allocation4], 128
    $region17: #{tpu_custom_call.1} parent=1 // pred_fallthru
      _
    %38 = vsyncpa [#allocation3], 1
    %39 = vsyncpa [#allocation4], 1

</llo_original>
